<compile_context>
chip_gen: v5e
topology: v5e:2x2
jax: 0.10.0
libtpu: 0.0.40
codegen_flags: <defaults>
</compile_context>

<pallas_src>
import functools

import jax
import jax.numpy as jnp
from jax.experimental import pallas as pl
from jax.experimental.pallas import tpu as pltpu


def _layernorm_kernel(alpha_ref, bias_ref, x_ref, o_ref, *, eps, d_model):
    # alpha_ref/bias_ref: (1, 1) scalars; x_ref/o_ref: (tm, d_model)
    x = x_ref[...]
    mean = jnp.mean(x, axis=-1, keepdims=True)
    centered = x - mean
    # torch.std() default is the unbiased (Bessel-corrected) estimator: /(D-1)
    var = jnp.sum(centered * centered, axis=-1, keepdims=True) / (d_model - 1)
    std = jnp.sqrt(var)
    alpha = alpha_ref[...]          # (1, 1) broadcasts over the tile
    bias = bias_ref[...]
    o_ref[...] = (alpha * centered / (std + eps) + bias).astype(o_ref.dtype)


@functools.partial(jax.jit, static_argnames=("eps", "tm"))
def encoder_forward(x, mask, alpha, bias, *, eps=1e-6, tm=256):
    """Encoder.forward(x, mask): layers (identity here) then LayerNormalization.

    x: (B, S, d_model) float32; alpha, bias: shape-(1,) parameters.
    """
    # TODO(synk): Encoder.layers is an externally supplied nn.ModuleList whose
    # layer type is not part of this spec; the layer stack is treated as
    # identity (mask unused) and only the final LayerNormalization is computed.
    del mask

    assert tm % 8 == 0, "row tile must be a multiple of 8 (sublane count)"
    B, S, D = x.shape
    N = B * S
    x2 = x.reshape(N, D)

    # Pad the row count up to a full tile so the last tile is unmasked and no
    # rows are silently dropped (pl.cdiv + pad instead of N // tm).
    n_tiles = pl.cdiv(N, tm)
    Np = n_tiles * tm
    if Np != N:
        x2 = jnp.pad(x2, ((0, Np - N), (0, 0)))

    a2 = jnp.asarray(alpha, jnp.float32).reshape(1, 1)
    b2 = jnp.asarray(bias, jnp.float32).reshape(1, 1)

    kernel = functools.partial(_layernorm_kernel, eps=float(eps), d_model=D)

    # VMEM budget: in + out tiles, double-buffered, plus slack; stay under the
    # ~48 MiB that is safe on v7x's 64 MiB physical VMEM.
    tile_bytes = tm * D * 4
    vmem_limit = int(min(max(8 * tile_bytes, 16 << 20), 48 << 20))

    cost = pl.CostEstimate(
        flops=8 * Np * D,            # mean, center, square, sum, scale, shift
        transcendentals=Np,          # one sqrt (+ divide) per row
        bytes_accessed=2 * Np * D * 4 + 8,
    )

    out = pl.pallas_call(
        kernel,
        out_shape=jax.ShapeDtypeStruct((Np, D), x.dtype),
        grid=(n_tiles,),
        in_specs=[
            pl.BlockSpec((1, 1), lambda i: (0, 0)),      # alpha
            pl.BlockSpec((1, 1), lambda i: (0, 0)),      # bias
            pl.BlockSpec((tm, D), lambda i: (i, 0)),     # x row tile
        ],
        out_specs=pl.BlockSpec((tm, D), lambda i: (i, 0)),
        compiler_params=pltpu.CompilerParams(
            dimension_semantics=("parallel",),
            vmem_limit_bytes=vmem_limit,
        ),
        cost_estimate=cost,
    )(a2, b2, x2)

    return out[:N].reshape(B, S, D)


if __name__ == "__main__":
    # Small shapes consistent with the module: (batch, seq, d_model).
    B, S, d_model = 2, 8, 32

    key = jax.random.PRNGKey(0)
    kx, _ = jax.random.split(key, 2)

    x = jax.random.normal(kx, (B, S, d_model), dtype=jnp.float32)
    mask = jnp.ones((B, 1, S, S), dtype=jnp.float32)   # unused (layers == identity)
    # nn.Parameter(torch.ones(1)) / torch.zeros(1); use non-trivial values to
    # exercise the scale/shift broadcast.
    alpha = jnp.full((1,), 1.3, dtype=jnp.float32)
    bias = jnp.full((1,), -0.2, dtype=jnp.float32)

    out = encoder_forward(x, mask, alpha, bias)
    out = jax.block_until_ready(out)

    # Pure-JAX reference with exact torch semantics:
    # unbiased std (ddof=1), divide by (std + eps), scalar alpha/bias.
    eps = 1e-6
    mean = x.mean(axis=-1, keepdims=True)
    std = jnp.std(x, axis=-1, keepdims=True, ddof=1)
    ref = alpha * (x - mean) / (std + eps) + bias

    assert out.shape == (B, S, d_model)
    assert jnp.allclose(out, ref, atol=1e-5, rtol=1e-5), "mismatch vs reference"

    print("KERNEL_OK")
</pallas_src>

<mosaic_0001>
module attributes {stable_mosaic.version = 11 : i64} {
  func.func @_layernorm_kernel(%arg0: i32, %arg1: memref<1x1xf32, #tpu.memory_space<vmem>>, %arg2: memref<1x1xf32, #tpu.memory_space<vmem>>, %arg3: memref<256x32xf32, #tpu.memory_space<vmem>>, %arg4: memref<256x32xf32, #tpu.memory_space<vmem>>) attributes {dimension_semantics = [#tpu.dimension_semantics<parallel>], iteration_bounds = array<i64: 1>, scalar_prefetch = 0 : i64, scratch_operands = 0 : i64, tpu.core_type = #tpu.core_type<tc>, window_params = [{pipeline_mode = #tpu.pipeline_mode<synchronous>, transform_indices = @transform_0, window_bounds = array<i64: 1, 1>}, {pipeline_mode = #tpu.pipeline_mode<synchronous>, transform_indices = @transform_1, window_bounds = array<i64: 1, 1>}, {transform_indices = @transform_2, window_bounds = array<i64: 256, 32>}, {transform_indices = @transform_3, window_bounds = array<i64: 256, 32>}]} {
    %c0 = arith.constant 0 : index
    %c0_0 = arith.constant 0 : index
    %0 = vector.load %arg3[%c0, %c0_0] : memref<256x32xf32, #tpu.memory_space<vmem>>, vector<256x32xf32>
    %cst = arith.constant dense<0.000000e+00> : vector<256xf32>
    %1 = vector.multi_reduction <add>, %0, %cst [1] : vector<256x32xf32> to vector<256xf32>
    %2 = vector.shape_cast %1 : vector<256xf32> to vector<256x1xf32>
    %cst_1 = arith.constant 3.200000e+01 : f32
    %3 = vector.broadcast %cst_1 : f32 to vector<256x1xf32>
    %4 = arith.divf %2, %3 : vector<256x1xf32>
    %5 = vector.broadcast %4 : vector<256x1xf32> to vector<256x32xf32>
    %6 = arith.subf %0, %5 : vector<256x32xf32>
    %7 = arith.mulf %6, %6 : vector<256x32xf32>
    %cst_2 = arith.constant dense<0.000000e+00> : vector<256xf32>
    %8 = vector.multi_reduction <add>, %7, %cst_2 [1] : vector<256x32xf32> to vector<256xf32>
    %9 = vector.shape_cast %8 : vector<256xf32> to vector<256x1xf32>
    %cst_3 = arith.constant 3.100000e+01 : f32
    %10 = vector.broadcast %cst_3 : f32 to vector<256x1xf32>
    %11 = arith.divf %9, %10 : vector<256x1xf32>
    %12 = math.sqrt %11 : vector<256x1xf32>
    %c0_4 = arith.constant 0 : index
    %c0_5 = arith.constant 0 : index
    %13 = vector.load %arg1[%c0_4, %c0_5] : memref<1x1xf32, #tpu.memory_space<vmem>>, vector<1x1xf32>
    %c0_6 = arith.constant 0 : index
    %c0_7 = arith.constant 0 : index
    %14 = vector.load %arg2[%c0_6, %c0_7] : memref<1x1xf32, #tpu.memory_space<vmem>>, vector<1x1xf32>
    %15 = vector.broadcast %13 : vector<1x1xf32> to vector<256x32xf32>
    %16 = arith.mulf %15, %6 : vector<256x32xf32>
    %cst_8 = arith.constant 9.99999997E-7 : f32
    %17 = vector.broadcast %cst_8 : f32 to vector<256x1xf32>
    %18 = arith.addf %12, %17 : vector<256x1xf32>
    %19 = vector.broadcast %18 : vector<256x1xf32> to vector<256x32xf32>
    %20 = arith.divf %16, %19 : vector<256x32xf32>
    %21 = vector.broadcast %14 : vector<1x1xf32> to vector<256x32xf32>
    %22 = arith.addf %20, %21 : vector<256x32xf32>
    %c0_9 = arith.constant 0 : index
    %c0_10 = arith.constant 0 : index
    %23 = vector.load %arg4[%c0_9, %c0_10] : memref<256x32xf32, #tpu.memory_space<vmem>>, vector<256x32xf32>
    tpu.vector_store %arg4[%c0_9, %c0_10], %22 {strides = array<i32>} : memref<256x32xf32, #tpu.memory_space<vmem>>, vector<256x32xf32>,
    return
  }
  func.func @transform_0(%arg0: i32) -> (i32, i32) {
    %c0_i32 = arith.constant 0 : i32
    %c0_i32_0 = arith.constant 0 : i32
    %c0_i32_1 = arith.constant 0 : i32
    return %c0_i32, %c0_i32_0 : i32, i32
  }
  func.func @transform_1(%arg0: i32) -> (i32, i32) {
    %c0_i32 = arith.constant 0 : i32
    %c0_i32_0 = arith.constant 0 : i32
    %c0_i32_1 = arith.constant 0 : i32
    return %c0_i32, %c0_i32_0 : i32, i32
  }
  func.func @transform_2(%arg0: i32) -> (i32, i32) {
    %c0_i32 = arith.constant 0 : i32
    %c0_i32_0 = arith.constant 0 : i32
    return %arg0, %c0_i32 : i32, i32
  }
  func.func @transform_3(%arg0: i32) -> (i32, i32) {
    %c0_i32 = arith.constant 0 : i32
    %c0_i32_0 = arith.constant 0 : i32
    return %arg0, %c0_i32 : i32, i32
  }
}

</mosaic_0001>

<llo_original>
// kernel: encoder_forward.1
$region0: #{encoder_forward.1}
  #allocation0 [shape = 'u32[]', space=smem, size = 0x4, offset = 0x4, fixed_abs, tag = 'smem constant byte address 0x4 - core index']
  #allocation1 [shape = 'u32[72,128]{1,0:T(1,128)}', space=vmem, size = 0x9000, scoped, tag = 'internal scratch']
  #allocation2 [shape = 'f32[1,1]{1,0:T(1,128)S(1)}', space=vmem, size = 0x200, scoped, tag = 'scoped memory for encoder_forward.1']
  #allocation3 [shape = 'f32[1,1]{1,0:T(1,128)S(1)}', space=vmem, size = 0x200, scoped, tag = 'scoped memory for encoder_forward.1']
  %s0 = inlined_call_operand.<no memory space> [shape: f32[1,1], index: 0, kind: input, shape index: {}]
  %s1 = inlined_call_operand.<no memory space> [shape: f32[1,1], index: 1, kind: input, shape index: {}]
  %s2 = inlined_call_operand.vmem [shape: f32[256,32], index: 2, kind: input, shape index: {}]
  %s3 = inlined_call_operand.vmem [shape: f32[256,32], index: 3, kind: output, shape index: {}]
  %s4 = sld [smem:[#allocation0]]
  $region22: #{encoder_forward.1} parent=0
    _
  %s6 = ssub.s32 1, %s4
  %s7 = scalar_select 0, %s6, %s4
  %v8 = vstv %s0
  %9 = vst [vmem:[#allocation2] sm:$0x1] %v8
  %v10 = vstv %s1
  %11 = vst [vmem:[#allocation3] sm:$0x1] %v10
  // Predicated region
  $region2: #{encoder_forward.1} parent=0 // pred_check
    _
  $region3: #{encoder_forward.1} parent=0 // pred_check_branch
    %13 = sbr.rel (0) target = $region5
  $region4: #{encoder_forward.1} parent=0 // pred_region
    _
  $region5: #{encoder_forward.1} parent=0 // pred_fallthru
    _
  // Predicated region
  $region6: #{encoder_forward.1} parent=0 // pred_check
    _
  $region7: #{encoder_forward.1} parent=0 // pred_check_branch
    %15 = sbr.rel (0) target = $region9
  $region8: #{encoder_forward.1} parent=0 // pred_region
    _
  $region9: #{encoder_forward.1} parent=0 // pred_fallthru
    _
  // Predicated region
  $region10: #{encoder_forward.1} parent=0 // pred_check
    _
  $region11: #{encoder_forward.1} parent=0 // pred_check_branch
    %17 = sbr.rel (0) target = $region13
  $region12: #{encoder_forward.1} parent=0 // pred_region
    _
  $region13: #{encoder_forward.1} parent=0 // pred_fallthru
    _
  %v18 = vld [vmem:[%s2] sm:$0xff]
  %v19 = vld [vmem:[%s2 + $0x8] sm:$0xff]
  %v20 = vld [vmem:[%s2 + $0x10] sm:$0xff]
  %v21 = vld [vmem:[%s2 + $0x18] sm:$0xff]
  %v22 = vld [vmem:[%s2 + $0x20] sm:$0xff]
  %v23 = vld [vmem:[%s2 + $0x28] sm:$0xff]
  %v24 = vld [vmem:[%s2 + $0x30] sm:$0xff]
  %v25 = vld [vmem:[%s2 + $0x38] sm:$0xff]
  %v26 = vld [vmem:[%s2 + $0x40] sm:$0xff]
  %v27 = vld [vmem:[%s2 + $0x48] sm:$0xff]
  %v28 = vld [vmem:[%s2 + $0x50] sm:$0xff]
  %v29 = vld [vmem:[%s2 + $0x58] sm:$0xff]
  %v30 = vld [vmem:[%s2 + $0x60] sm:$0xff]
  %v31 = vld [vmem:[%s2 + $0x68] sm:$0xff]
  %v32 = vld [vmem:[%s2 + $0x70] sm:$0xff]
  %v33 = vld [vmem:[%s2 + $0x78] sm:$0xff]
  %v34 = vld [vmem:[%s2 + $0x80] sm:$0xff]
  %v35 = vld [vmem:[%s2 + $0x88] sm:$0xff]
  %v36 = vld [vmem:[%s2 + $0x90] sm:$0xff]
  %v37 = vld [vmem:[%s2 + $0x98] sm:$0xff]
  %v38 = vld [vmem:[%s2 + $0xa0] sm:$0xff]
  %v39 = vld [vmem:[%s2 + $0xa8] sm:$0xff]
  %v40 = vld [vmem:[%s2 + $0xb0] sm:$0xff]
  %v41 = vld [vmem:[%s2 + $0xb8] sm:$0xff]
  %v42 = vld [vmem:[%s2 + $0xc0] sm:$0xff]
  %v43 = vld [vmem:[%s2 + $0xc8] sm:$0xff]
  %v44 = vld [vmem:[%s2 + $0xd0] sm:$0xff]
  %v45 = vld [vmem:[%s2 + $0xd8] sm:$0xff]
  %v46 = vld [vmem:[%s2 + $0xe0] sm:$0xff]
  %v47 = vld [vmem:[%s2 + $0xe8] sm:$0xff]
  %v48 = vld [vmem:[%s2 + $0xf0] sm:$0xff]
  %v49 = vld [vmem:[%s2 + $0xf8] sm:$0xff]
  %vm50 = vcmask 261120
  %v51 = vsel %vm50, %v18, 0.0
  %52 = vadd.xlane.f32.xlu0 %v51
  %v53 = vpop.xlane.xlu0 %52
  %v54 = vsel %vm50, %v19, 0.0
  %55 = vadd.xlane.f32.xlu0 %v54
  %v56 = vpop.xlane.xlu0 %55
  %v57 = vsel %vm50, %v20, 0.0
  %58 = vadd.xlane.f32.xlu0 %v57
  %v59 = vpop.xlane.xlu0 %58
  %v60 = vsel %vm50, %v21, 0.0
  %61 = vadd.xlane.f32.xlu0 %v60
  %v62 = vpop.xlane.xlu0 %61
  %v63 = vsel %vm50, %v22, 0.0
  %64 = vadd.xlane.f32.xlu0 %v63
  %v65 = vpop.xlane.xlu0 %64
  %v66 = vsel %vm50, %v23, 0.0
  %67 = vadd.xlane.f32.xlu0 %v66
  %v68 = vpop.xlane.xlu0 %67
  %v69 = vsel %vm50, %v24, 0.0
  %70 = vadd.xlane.f32.xlu0 %v69
  %v71 = vpop.xlane.xlu0 %70
  %v72 = vsel %vm50, %v25, 0.0
  %73 = vadd.xlane.f32.xlu0 %v72
  %v74 = vpop.xlane.xlu0 %73
  %v75 = vsel %vm50, %v26, 0.0
  %76 = vadd.xlane.f32.xlu0 %v75
  %v77 = vpop.xlane.xlu0 %76
  %v78 = vsel %vm50, %v27, 0.0
  %79 = vadd.xlane.f32.xlu0 %v78
  %v80 = vpop.xlane.xlu0 %79
  %v81 = vsel %vm50, %v28, 0.0
  %82 = vadd.xlane.f32.xlu0 %v81
  %v83 = vpop.xlane.xlu0 %82
  %v84 = vsel %vm50, %v29, 0.0
  %85 = vadd.xlane.f32.xlu0 %v84
  %v86 = vpop.xlane.xlu0 %85
  %v87 = vsel %vm50, %v30, 0.0
  %88 = vadd.xlane.f32.xlu0 %v87
  %v89 = vpop.xlane.xlu0 %88
  %v90 = vsel %vm50, %v31, 0.0
  %91 = vadd.xlane.f32.xlu0 %v90
  %v92 = vpop.xlane.xlu0 %91
  %v93 = vsel %vm50, %v32, 0.0
  %94 = vadd.xlane.f32.xlu0 %v93
  %v95 = vpop.xlane.xlu0 %94
  %v96 = vsel %vm50, %v33, 0.0
  %97 = vadd.xlane.f32.xlu0 %v96
  %v98 = vpop.xlane.xlu0 %97
  %v99 = vsel %vm50, %v34, 0.0
  %100 = vadd.xlane.f32.xlu0 %v99
  %v101 = vpop.xlane.xlu0 %100
  %v102 = vsel %vm50, %v35, 0.0
  %103 = vadd.xlane.f32.xlu0 %v102
  %v104 = vpop.xlane.xlu0 %103
  %v105 = vsel %vm50, %v36, 0.0
  %106 = vadd.xlane.f32.xlu0 %v105
  %v107 = vpop.xlane.xlu0 %106
  %v108 = vsel %vm50, %v37, 0.0
  %109 = vadd.xlane.f32.xlu0 %v108
  %v110 = vpop.xlane.xlu0 %109
  %v111 = vsel %vm50, %v38, 0.0
  %112 = vadd.xlane.f32.xlu0 %v111
  %v113 = vpop.xlane.xlu0 %112
  %v114 = vsel %vm50, %v39, 0.0
  %115 = vadd.xlane.f32.xlu0 %v114
  %v116 = vpop.xlane.xlu0 %115
  %v117 = vsel %vm50, %v40, 0.0
  %118 = vadd.xlane.f32.xlu0 %v117
  %v119 = vpop.xlane.xlu0 %118
  %v120 = vsel %vm50, %v41, 0.0
  %121 = vadd.xlane.f32.xlu0 %v120
  %v122 = vpop.xlane.xlu0 %121
  %v123 = vsel %vm50, %v42, 0.0
  %124 = vadd.xlane.f32.xlu0 %v123
  %v125 = vpop.xlane.xlu0 %124
  %v126 = vsel %vm50, %v43, 0.0
  %127 = vadd.xlane.f32.xlu0 %v126
  %v128 = vpop.xlane.xlu0 %127
  %v129 = vsel %vm50, %v44, 0.0
  %130 = vadd.xlane.f32.xlu0 %v129
  %v131 = vpop.xlane.xlu0 %130
  %v132 = vsel %vm50, %v45, 0.0
  %133 = vadd.xlane.f32.xlu0 %v132
  %v134 = vpop.xlane.xlu0 %133
  %v135 = vsel %vm50, %v46, 0.0
  %136 = vadd.xlane.f32.xlu0 %v135
  %v137 = vpop.xlane.xlu0 %136
  %v138 = vsel %vm50, %v47, 0.0
  %139 = vadd.xlane.f32.xlu0 %v138
  %v140 = vpop.xlane.xlu0 %139
  %v141 = vsel %vm50, %v48, 0.0
  %142 = vadd.xlane.f32.xlu0 %v141
  %v143 = vpop.xlane.xlu0 %142
  %v144 = vsel %vm50, %v49, 0.0
  %145 = vadd.xlane.f32.xlu0 %v144
  %v146 = vpop.xlane.xlu0 %145
  %v147 = vrcp.pop 32.0
  %v148 = vmul.f32 32.0, %v147
  %v149 = vsub.f32 1.0, %v148
  %v150 = vmul.f32 %v147, %v149
  %v151 = vadd.f32 %v147, %v150
  %vm152 = vweird.f32 %v147
  %v153 = vsel %vm152, %v147, %v151
  %v154 = vmul.f32 %v53, %v153
  %v155 = vmul.f32 %v56, %v153
  %v156 = vmul.f32 %v59, %v153
  %v157 = vmul.f32 %v62, %v153
  %v158 = vmul.f32 %v65, %v153
  %v159 = vmul.f32 %v68, %v153
  %v160 = vmul.f32 %v71, %v153
  %v161 = vmul.f32 %v74, %v153
  %v162 = vmul.f32 %v77, %v153
  %v163 = vmul.f32 %v80, %v153
  %v164 = vmul.f32 %v83, %v153
  %v165 = vmul.f32 %v86, %v153
  %v166 = vmul.f32 %v89, %v153
  %v167 = vmul.f32 %v92, %v153
  %v168 = vmul.f32 %v95, %v153
  %v169 = vmul.f32 %v98, %v153
  %v170 = vmul.f32 %v101, %v153
  %v171 = vmul.f32 %v104, %v153
  %v172 = vmul.f32 %v107, %v153
  %v173 = vmul.f32 %v110, %v153
  %v174 = vmul.f32 %v113, %v153
  %v175 = vmul.f32 %v116, %v153
  %v176 = vmul.f32 %v119, %v153
  %v177 = vmul.f32 %v122, %v153
  %v178 = vmul.f32 %v125, %v153
  %v179 = vmul.f32 %v128, %v153
  %v180 = vmul.f32 %v131, %v153
  %v181 = vmul.f32 %v134, %v153
  %v182 = vmul.f32 %v137, %v153
  %v183 = vmul.f32 %v140, %v153
  %v184 = vmul.f32 %v143, %v153
  %v185 = vmul.f32 %v146, %v153
  %v186 = vsub.f32 %v18, %v154
  %v187 = vsub.f32 %v19, %v155
  %v188 = vsub.f32 %v20, %v156
  %v189 = vsub.f32 %v21, %v157
  %v190 = vsub.f32 %v22, %v158
  %v191 = vsub.f32 %v23, %v159
  %v192 = vsub.f32 %v24, %v160
  %v193 = vsub.f32 %v25, %v161
  %v194 = vsub.f32 %v26, %v162
  %v195 = vsub.f32 %v27, %v163
  %v196 = vsub.f32 %v28, %v164
  %v197 = vsub.f32 %v29, %v165
  %v198 = vsub.f32 %v30, %v166
  %v199 = vsub.f32 %v31, %v167
  %v200 = vsub.f32 %v32, %v168
  %v201 = vsub.f32 %v33, %v169
  %v202 = vsub.f32 %v34, %v170
  %v203 = vsub.f32 %v35, %v171
  %v204 = vsub.f32 %v36, %v172
  %v205 = vsub.f32 %v37, %v173
  %v206 = vsub.f32 %v38, %v174
  %v207 = vsub.f32 %v39, %v175
  %v208 = vsub.f32 %v40, %v176
  %v209 = vsub.f32 %v41, %v177
  %v210 = vsub.f32 %v42, %v178
  %v211 = vsub.f32 %v43, %v179
  %v212 = vsub.f32 %v44, %v180
  %v213 = vsub.f32 %v45, %v181
  %v214 = vsub.f32 %v46, %v182
  %v215 = vsub.f32 %v47, %v183
  %v216 = vsub.f32 %v48, %v184
  %v217 = vsub.f32 %v49, %v185
  %v218 = vmul.f32 %v186, %v186
  %v219 = vmul.f32 %v187, %v187
  %v220 = vmul.f32 %v188, %v188
  %v221 = vmul.f32 %v189, %v189
  %v222 = vmul.f32 %v190, %v190
  %v223 = vmul.f32 %v191, %v191
  %v224 = vmul.f32 %v192, %v192
  %v225 = vmul.f32 %v193, %v193
  %v226 = vmul.f32 %v194, %v194
  %v227 = vmul.f32 %v195, %v195
  %v228 = vmul.f32 %v196, %v196
  %v229 = vmul.f32 %v197, %v197
  %v230 = vmul.f32 %v198, %v198
  %v231 = vmul.f32 %v199, %v199
  %v232 = vmul.f32 %v200, %v200
  %v233 = vmul.f32 %v201, %v201
  %v234 = vmul.f32 %v202, %v202
  %v235 = vmul.f32 %v203, %v203
  %v236 = vmul.f32 %v204, %v204
  %v237 = vmul.f32 %v205, %v205
  %v238 = vmul.f32 %v206, %v206
  %v239 = vmul.f32 %v207, %v207
  %v240 = vmul.f32 %v208, %v208
  %v241 = vmul.f32 %v209, %v209
  %v242 = vmul.f32 %v210, %v210
  %v243 = vmul.f32 %v211, %v211
  %v244 = vmul.f32 %v212, %v212
  %v245 = vmul.f32 %v213, %v213
  %v246 = vmul.f32 %v214, %v214
  %v247 = vmul.f32 %v215, %v215
  %v248 = vmul.f32 %v216, %v216
  %v249 = vmul.f32 %v217, %v217
  %v250 = vsel %vm50, %v218, 0.0
  %251 = vadd.xlane.f32.xlu0 %v250
  %v252 = vpop.xlane.xlu0 %251
  %v253 = vsel %vm50, %v219, 0.0
  %254 = vadd.xlane.f32.xlu0 %v253
  %v255 = vpop.xlane.xlu0 %254
  %v256 = vsel %vm50, %v220, 0.0
  %257 = vadd.xlane.f32.xlu0 %v256
  %v258 = vpop.xlane.xlu0 %257
  %v259 = vsel %vm50, %v221, 0.0
  %260 = vadd.xlane.f32.xlu0 %v259
  %v261 = vpop.xlane.xlu0 %260
  %v262 = vsel %vm50, %v222, 0.0
  %263 = vadd.xlane.f32.xlu0 %v262
  %v264 = vpop.xlane.xlu0 %263
  %v265 = vsel %vm50, %v223, 0.0
  %266 = vadd.xlane.f32.xlu0 %v265
  %v267 = vpop.xlane.xlu0 %266
  %v268 = vsel %vm50, %v224, 0.0
  %269 = vadd.xlane.f32.xlu0 %v268
  %v270 = vpop.xlane.xlu0 %269
  %v271 = vsel %vm50, %v225, 0.0
  %272 = vadd.xlane.f32.xlu0 %v271
  %v273 = vpop.xlane.xlu0 %272
  %v274 = vsel %vm50, %v226, 0.0
  %275 = vadd.xlane.f32.xlu0 %v274
  %v276 = vpop.xlane.xlu0 %275
  %v277 = vsel %vm50, %v227, 0.0
  %278 = vadd.xlane.f32.xlu0 %v277
  %v279 = vpop.xlane.xlu0 %278
  %v280 = vsel %vm50, %v228, 0.0
  %281 = vadd.xlane.f32.xlu0 %v280
  %v282 = vpop.xlane.xlu0 %281
  %v283 = vsel %vm50, %v229, 0.0
  %284 = vadd.xlane.f32.xlu0 %v283
  %v285 = vpop.xlane.xlu0 %284
  %v286 = vsel %vm50, %v230, 0.0
  %287 = vadd.xlane.f32.xlu0 %v286
  %v288 = vpop.xlane.xlu0 %287
  %v289 = vsel %vm50, %v231, 0.0
  %290 = vadd.xlane.f32.xlu0 %v289
  %v291 = vpop.xlane.xlu0 %290
  %v292 = vsel %vm50, %v232, 0.0
  %293 = vadd.xlane.f32.xlu0 %v292
  %v294 = vpop.xlane.xlu0 %293
  %v295 = vsel %vm50, %v233, 0.0
  %296 = vadd.xlane.f32.xlu0 %v295
  %v297 = vpop.xlane.xlu0 %296
  %v298 = vsel %vm50, %v234, 0.0
  %299 = vadd.xlane.f32.xlu0 %v298
  %v300 = vpop.xlane.xlu0 %299
  %v301 = vsel %vm50, %v235, 0.0
  %302 = vadd.xlane.f32.xlu0 %v301
  %v303 = vpop.xlane.xlu0 %302
  %v304 = vsel %vm50, %v236, 0.0
  %305 = vadd.xlane.f32.xlu0 %v304
  %v306 = vpop.xlane.xlu0 %305
  %v307 = vsel %vm50, %v237, 0.0
  %308 = vadd.xlane.f32.xlu0 %v307
  %v309 = vpop.xlane.xlu0 %308
  %v310 = vsel %vm50, %v238, 0.0
  %311 = vadd.xlane.f32.xlu0 %v310
  %v312 = vpop.xlane.xlu0 %311
  %v313 = vsel %vm50, %v239, 0.0
  %314 = vadd.xlane.f32.xlu0 %v313
  %v315 = vpop.xlane.xlu0 %314
  %v316 = vsel %vm50, %v240, 0.0
  %317 = vadd.xlane.f32.xlu0 %v316
  %v318 = vpop.xlane.xlu0 %317
  %v319 = vsel %vm50, %v241, 0.0
  %320 = vadd.xlane.f32.xlu0 %v319
  %v321 = vpop.xlane.xlu0 %320
  %v322 = vsel %vm50, %v242, 0.0
  %323 = vadd.xlane.f32.xlu0 %v322
  %v324 = vpop.xlane.xlu0 %323
  %v325 = vsel %vm50, %v243, 0.0
  %326 = vadd.xlane.f32.xlu0 %v325
  %v327 = vpop.xlane.xlu0 %326
  %v328 = vsel %vm50, %v244, 0.0
  %329 = vadd.xlane.f32.xlu0 %v328
  %v330 = vpop.xlane.xlu0 %329
  %v331 = vsel %vm50, %v245, 0.0
  %332 = vadd.xlane.f32.xlu0 %v331
  %v333 = vpop.xlane.xlu0 %332
  %v334 = vsel %vm50, %v246, 0.0
  %335 = vadd.xlane.f32.xlu0 %v334
  %v336 = vpop.xlane.xlu0 %335
  %v337 = vsel %vm50, %v247, 0.0
  %338 = vadd.xlane.f32.xlu0 %v337
  %v339 = vpop.xlane.xlu0 %338
  %v340 = vsel %vm50, %v248, 0.0
  %341 = vadd.xlane.f32.xlu0 %v340
  %v342 = vpop.xlane.xlu0 %341
  %v343 = vsel %vm50, %v249, 0.0
  %344 = vadd.xlane.f32.xlu0 %v343
  %v345 = vpop.xlane.xlu0 %344
  %v346 = vrcp.pop 31.0
  %v347 = vmul.f32 31.0, %v346
  %v348 = vsub.f32 1.0, %v347
  %v349 = vmul.f32 %v346, %v348
  %v350 = vadd.f32 %v346, %v349
  %vm351 = vweird.f32 %v346
  %v352 = vsel %vm351, %v346, %v350
  %v353 = vmul.f32 %v252, %v352
  %v354 = vmul.f32 %v255, %v352
  %v355 = vmul.f32 %v258, %v352
  %v356 = vmul.f32 %v261, %v352
  %v357 = vmul.f32 %v264, %v352
  %v358 = vmul.f32 %v267, %v352
  %v359 = vmul.f32 %v270, %v352
  %v360 = vmul.f32 %v273, %v352
  %v361 = vmul.f32 %v276, %v352
  %v362 = vmul.f32 %v279, %v352
  %v363 = vmul.f32 %v282, %v352
  %v364 = vmul.f32 %v285, %v352
  %v365 = vmul.f32 %v288, %v352
  %v366 = vmul.f32 %v291, %v352
  %v367 = vmul.f32 %v294, %v352
  %v368 = vmul.f32 %v297, %v352
  %v369 = vmul.f32 %v300, %v352
  %v370 = vmul.f32 %v303, %v352
  %v371 = vmul.f32 %v306, %v352
  %v372 = vmul.f32 %v309, %v352
  %v373 = vmul.f32 %v312, %v352
  %v374 = vmul.f32 %v315, %v352
  %v375 = vmul.f32 %v318, %v352
  %v376 = vmul.f32 %v321, %v352
  %v377 = vmul.f32 %v324, %v352
  %v378 = vmul.f32 %v327, %v352
  %v379 = vmul.f32 %v330, %v352
  %v380 = vmul.f32 %v333, %v352
  %v381 = vmul.f32 %v336, %v352
  %v382 = vmul.f32 %v339, %v352
  %v383 = vmul.f32 %v342, %v352
  %v384 = vmul.f32 %v345, %v352
  %v385 = vrsqrt.pop %v353
  %v386 = vmul.f32 %v385, %v353
  %v387 = vmul.f32 %v386, %v385
  %v388 = vmul.f32 0.5, %v387
  %v389 = vsub.f32 1.5, %v388
  %v390 = vmul.f32 %v385, %v389
  %v391 = vmul.f32 %v353, %v390
  %vm392 = vcmp.eq.f32.partialorder %v353, inf
  %v393 = vsel %vm392, %v353, %v391
  %vm394 = vcmp.eq.f32.partialorder %v353, 0.0
  %v395 = vand.u32 %v353, 2147483648
  %v396 = vsel %vm394, %v395, %v393
  %v397 = vrsqrt.pop %v354
  %v398 = vmul.f32 %v397, %v354
  %v399 = vmul.f32 %v398, %v397
  %v400 = vmul.f32 0.5, %v399
  %v401 = vsub.f32 1.5, %v400
  %v402 = vmul.f32 %v397, %v401
  %v403 = vmul.f32 %v354, %v402
  %vm404 = vcmp.eq.f32.partialorder %v354, inf
  %v405 = vsel %vm404, %v354, %v403
  %vm406 = vcmp.eq.f32.partialorder %v354, 0.0
  %v407 = vand.u32 %v354, 2147483648
  %v408 = vsel %vm406, %v407, %v405
  %v409 = vrsqrt.pop %v355
  %v410 = vmul.f32 %v409, %v355
  %v411 = vmul.f32 %v410, %v409
  %v412 = vmul.f32 0.5, %v411
  %v413 = vsub.f32 1.5, %v412
  %v414 = vmul.f32 %v409, %v413
  %v415 = vmul.f32 %v355, %v414
  %vm416 = vcmp.eq.f32.partialorder %v355, inf
  %v417 = vsel %vm416, %v355, %v415
  %vm418 = vcmp.eq.f32.partialorder %v355, 0.0
  %v419 = vand.u32 %v355, 2147483648
  %v420 = vsel %vm418, %v419, %v417
  %v421 = vrsqrt.pop %v356
  %v422 = vmul.f32 %v421, %v356
  %v423 = vmul.f32 %v422, %v421
  %v424 = vmul.f32 0.5, %v423
  %v425 = vsub.f32 1.5, %v424
  %v426 = vmul.f32 %v421, %v425
  %v427 = vmul.f32 %v356, %v426
  %vm428 = vcmp.eq.f32.partialorder %v356, inf
  %v429 = vsel %vm428, %v356, %v427
  %vm430 = vcmp.eq.f32.partialorder %v356, 0.0
  %v431 = vand.u32 %v356, 2147483648
  %v432 = vsel %vm430, %v431, %v429
  %v433 = vrsqrt.pop %v357
  %v434 = vmul.f32 %v433, %v357
  %v435 = vmul.f32 %v434, %v433
  %v436 = vmul.f32 0.5, %v435
  %v437 = vsub.f32 1.5, %v436
  %v438 = vmul.f32 %v433, %v437
  %v439 = vmul.f32 %v357, %v438
  %vm440 = vcmp.eq.f32.partialorder %v357, inf
  %v441 = vsel %vm440, %v357, %v439
  %vm442 = vcmp.eq.f32.partialorder %v357, 0.0
  %v443 = vand.u32 %v357, 2147483648
  %v444 = vsel %vm442, %v443, %v441
  %v445 = vrsqrt.pop %v358
  %v446 = vmul.f32 %v445, %v358
  %v447 = vmul.f32 %v446, %v445
  %v448 = vmul.f32 0.5, %v447
  %v449 = vsub.f32 1.5, %v448
  %v450 = vmul.f32 %v445, %v449
  %v451 = vmul.f32 %v358, %v450
  %vm452 = vcmp.eq.f32.partialorder %v358, inf
  %v453 = vsel %vm452, %v358, %v451
  %vm454 = vcmp.eq.f32.partialorder %v358, 0.0
  %v455 = vand.u32 %v358, 2147483648
  %v456 = vsel %vm454, %v455, %v453
  %v457 = vrsqrt.pop %v359
  %v458 = vmul.f32 %v457, %v359
  %v459 = vmul.f32 %v458, %v457
  %v460 = vmul.f32 0.5, %v459
  %v461 = vsub.f32 1.5, %v460
  %v462 = vmul.f32 %v457, %v461
  %v463 = vmul.f32 %v359, %v462
  %vm464 = vcmp.eq.f32.partialorder %v359, inf
  %v465 = vsel %vm464, %v359, %v463
  %vm466 = vcmp.eq.f32.partialorder %v359, 0.0
  %v467 = vand.u32 %v359, 2147483648
  %v468 = vsel %vm466, %v467, %v465
  %v469 = vrsqrt.pop %v360
  %v470 = vmul.f32 %v469, %v360
  %v471 = vmul.f32 %v470, %v469
  %v472 = vmul.f32 0.5, %v471
  %v473 = vsub.f32 1.5, %v472
  %v474 = vmul.f32 %v469, %v473
  %v475 = vmul.f32 %v360, %v474
  %vm476 = vcmp.eq.f32.partialorder %v360, inf
  %v477 = vsel %vm476, %v360, %v475
  %vm478 = vcmp.eq.f32.partialorder %v360, 0.0
  %v479 = vand.u32 %v360, 2147483648
  %v480 = vsel %vm478, %v479, %v477
  %v481 = vrsqrt.pop %v361
  %v482 = vmul.f32 %v481, %v361
  %v483 = vmul.f32 %v482, %v481
  %v484 = vmul.f32 0.5, %v483
  %v485 = vsub.f32 1.5, %v484
  %v486 = vmul.f32 %v481, %v485
  %v487 = vmul.f32 %v361, %v486
  %vm488 = vcmp.eq.f32.partialorder %v361, inf
  %v489 = vsel %vm488, %v361, %v487
  %vm490 = vcmp.eq.f32.partialorder %v361, 0.0
  %v491 = vand.u32 %v361, 2147483648
  %v492 = vsel %vm490, %v491, %v489
  %v493 = vrsqrt.pop %v362
  %v494 = vmul.f32 %v493, %v362
  %v495 = vmul.f32 %v494, %v493
  %v496 = vmul.f32 0.5, %v495
  %v497 = vsub.f32 1.5, %v496
  %v498 = vmul.f32 %v493, %v497
  %v499 = vmul.f32 %v362, %v498
  %vm500 = vcmp.eq.f32.partialorder %v362, inf
  %v501 = vsel %vm500, %v362, %v499
  %vm502 = vcmp.eq.f32.partialorder %v362, 0.0
  %v503 = vand.u32 %v362, 2147483648
  %v504 = vsel %vm502, %v503, %v501
  %v505 = vrsqrt.pop %v363
  %v506 = vmul.f32 %v505, %v363
  %v507 = vmul.f32 %v506, %v505
  %v508 = vmul.f32 0.5, %v507
  %v509 = vsub.f32 1.5, %v508
  %v510 = vmul.f32 %v505, %v509
  %v511 = vmul.f32 %v363, %v510
  %vm512 = vcmp.eq.f32.partialorder %v363, inf
  %v513 = vsel %vm512, %v363, %v511
  %vm514 = vcmp.eq.f32.partialorder %v363, 0.0
  %v515 = vand.u32 %v363, 2147483648
  %v516 = vsel %vm514, %v515, %v513
  %v517 = vrsqrt.pop %v364
  %v518 = vmul.f32 %v517, %v364
  %v519 = vmul.f32 %v518, %v517
  %v520 = vmul.f32 0.5, %v519
  %v521 = vsub.f32 1.5, %v520
  %v522 = vmul.f32 %v517, %v521
  %v523 = vmul.f32 %v364, %v522
  %vm524 = vcmp.eq.f32.partialorder %v364, inf
  %v525 = vsel %vm524, %v364, %v523
  %vm526 = vcmp.eq.f32.partialorder %v364, 0.0
  %v527 = vand.u32 %v364, 2147483648
  %v528 = vsel %vm526, %v527, %v525
  %v529 = vrsqrt.pop %v365
  %v530 = vmul.f32 %v529, %v365
  %v531 = vmul.f32 %v530, %v529
  %v532 = vmul.f32 0.5, %v531
  %v533 = vsub.f32 1.5, %v532
  %v534 = vmul.f32 %v529, %v533
  %v535 = vmul.f32 %v365, %v534
  %vm536 = vcmp.eq.f32.partialorder %v365, inf
  %v537 = vsel %vm536, %v365, %v535
  %vm538 = vcmp.eq.f32.partialorder %v365, 0.0
  %v539 = vand.u32 %v365, 2147483648
  %v540 = vsel %vm538, %v539, %v537
  %v541 = vrsqrt.pop %v366
  %v542 = vmul.f32 %v541, %v366
  %v543 = vmul.f32 %v542, %v541
  %v544 = vmul.f32 0.5, %v543
  %v545 = vsub.f32 1.5, %v544
  %v546 = vmul.f32 %v541, %v545
  %v547 = vmul.f32 %v366, %v546
  %vm548 = vcmp.eq.f32.partialorder %v366, inf
  %v549 = vsel %vm548, %v366, %v547
  %vm550 = vcmp.eq.f32.partialorder %v366, 0.0
  %v551 = vand.u32 %v366, 2147483648
  %v552 = vsel %vm550, %v551, %v549
  %v553 = vrsqrt.pop %v367
  %v554 = vmul.f32 %v553, %v367
  %v555 = vmul.f32 %v554, %v553
  %v556 = vmul.f32 0.5, %v555
  %v557 = vsub.f32 1.5, %v556
  %v558 = vmul.f32 %v553, %v557
  %v559 = vmul.f32 %v367, %v558
  %vm560 = vcmp.eq.f32.partialorder %v367, inf
  %v561 = vsel %vm560, %v367, %v559
  %vm562 = vcmp.eq.f32.partialorder %v367, 0.0
  %v563 = vand.u32 %v367, 2147483648
  %v564 = vsel %vm562, %v563, %v561
  %v565 = vrsqrt.pop %v368
  %v566 = vmul.f32 %v565, %v368
  %v567 = vmul.f32 %v566, %v565
  %v568 = vmul.f32 0.5, %v567
  %v569 = vsub.f32 1.5, %v568
  %v570 = vmul.f32 %v565, %v569
  %v571 = vmul.f32 %v368, %v570
  %vm572 = vcmp.eq.f32.partialorder %v368, inf
  %v573 = vsel %vm572, %v368, %v571
  %vm574 = vcmp.eq.f32.partialorder %v368, 0.0
  %v575 = vand.u32 %v368, 2147483648
  %v576 = vsel %vm574, %v575, %v573
  %v577 = vrsqrt.pop %v369
  %v578 = vmul.f32 %v577, %v369
  %v579 = vmul.f32 %v578, %v577
  %v580 = vmul.f32 0.5, %v579
  %v581 = vsub.f32 1.5, %v580
  %v582 = vmul.f32 %v577, %v581
  %v583 = vmul.f32 %v369, %v582
  %vm584 = vcmp.eq.f32.partialorder %v369, inf
  %v585 = vsel %vm584, %v369, %v583
  %vm586 = vcmp.eq.f32.partialorder %v369, 0.0
  %v587 = vand.u32 %v369, 2147483648
  %v588 = vsel %vm586, %v587, %v585
  %v589 = vrsqrt.pop %v370
  %v590 = vmul.f32 %v589, %v370
  %v591 = vmul.f32 %v590, %v589
  %v592 = vmul.f32 0.5, %v591
  %v593 = vsub.f32 1.5, %v592
  %v594 = vmul.f32 %v589, %v593
  %v595 = vmul.f32 %v370, %v594
  %vm596 = vcmp.eq.f32.partialorder %v370, inf
  %v597 = vsel %vm596, %v370, %v595
  %vm598 = vcmp.eq.f32.partialorder %v370, 0.0
  %v599 = vand.u32 %v370, 2147483648
  %v600 = vsel %vm598, %v599, %v597
  %v601 = vrsqrt.pop %v371
  %v602 = vmul.f32 %v601, %v371
  %v603 = vmul.f32 %v602, %v601
  %v604 = vmul.f32 0.5, %v603
  %v605 = vsub.f32 1.5, %v604
  %v606 = vmul.f32 %v601, %v605
  %v607 = vmul.f32 %v371, %v606
  %vm608 = vcmp.eq.f32.partialorder %v371, inf
  %v609 = vsel %vm608, %v371, %v607
  %vm610 = vcmp.eq.f32.partialorder %v371, 0.0
  %v611 = vand.u32 %v371, 2147483648
  %v612 = vsel %vm610, %v611, %v609
  %v613 = vrsqrt.pop %v372
  %v614 = vmul.f32 %v613, %v372
  %v615 = vmul.f32 %v614, %v613
  %v616 = vmul.f32 0.5, %v615
  %v617 = vsub.f32 1.5, %v616
  %v618 = vmul.f32 %v613, %v617
  %v619 = vmul.f32 %v372, %v618
  %vm620 = vcmp.eq.f32.partialorder %v372, inf
  %v621 = vsel %vm620, %v372, %v619
  %vm622 = vcmp.eq.f32.partialorder %v372, 0.0
  %v623 = vand.u32 %v372, 2147483648
  %v624 = vsel %vm622, %v623, %v621
  %v625 = vrsqrt.pop %v373
  %v626 = vmul.f32 %v625, %v373
  %v627 = vmul.f32 %v626, %v625
  %v628 = vmul.f32 0.5, %v627
  %v629 = vsub.f32 1.5, %v628
  %v630 = vmul.f32 %v625, %v629
  %v631 = vmul.f32 %v373, %v630
  %vm632 = vcmp.eq.f32.partialorder %v373, inf
  %v633 = vsel %vm632, %v373, %v631
  %vm634 = vcmp.eq.f32.partialorder %v373, 0.0
  %v635 = vand.u32 %v373, 2147483648
  %v636 = vsel %vm634, %v635, %v633
  %v637 = vrsqrt.pop %v374
  %v638 = vmul.f32 %v637, %v374
  %v639 = vmul.f32 %v638, %v637
  %v640 = vmul.f32 0.5, %v639
  %v641 = vsub.f32 1.5, %v640
  %v642 = vmul.f32 %v637, %v641
  %v643 = vmul.f32 %v374, %v642
  %vm644 = vcmp.eq.f32.partialorder %v374, inf
  %v645 = vsel %vm644, %v374, %v643
  %vm646 = vcmp.eq.f32.partialorder %v374, 0.0
  %v647 = vand.u32 %v374, 2147483648
  %v648 = vsel %vm646, %v647, %v645
  %v649 = vrsqrt.pop %v375
  %v650 = vmul.f32 %v649, %v375
  %v651 = vmul.f32 %v650, %v649
  %v652 = vmul.f32 0.5, %v651
  %v653 = vsub.f32 1.5, %v652
  %v654 = vmul.f32 %v649, %v653
  %v655 = vmul.f32 %v375, %v654
  %vm656 = vcmp.eq.f32.partialorder %v375, inf
  %v657 = vsel %vm656, %v375, %v655
  %vm658 = vcmp.eq.f32.partialorder %v375, 0.0
  %v659 = vand.u32 %v375, 2147483648
  %v660 = vsel %vm658, %v659, %v657
  %v661 = vrsqrt.pop %v376
  %v662 = vmul.f32 %v661, %v376
  %v663 = vmul.f32 %v662, %v661
  %v664 = vmul.f32 0.5, %v663
  %v665 = vsub.f32 1.5, %v664
  %v666 = vmul.f32 %v661, %v665
  %v667 = vmul.f32 %v376, %v666
  %vm668 = vcmp.eq.f32.partialorder %v376, inf
  %v669 = vsel %vm668, %v376, %v667
  %vm670 = vcmp.eq.f32.partialorder %v376, 0.0
  %v671 = vand.u32 %v376, 2147483648
  %v672 = vsel %vm670, %v671, %v669
  %v673 = vrsqrt.pop %v377
  %v674 = vmul.f32 %v673, %v377
  %v675 = vmul.f32 %v674, %v673
  %v676 = vmul.f32 0.5, %v675
  %v677 = vsub.f32 1.5, %v676
  %v678 = vmul.f32 %v673, %v677
  %v679 = vmul.f32 %v377, %v678
  %vm680 = vcmp.eq.f32.partialorder %v377, inf
  %v681 = vsel %vm680, %v377, %v679
  %vm682 = vcmp.eq.f32.partialorder %v377, 0.0
  %v683 = vand.u32 %v377, 2147483648
  %v684 = vsel %vm682, %v683, %v681
  %v685 = vrsqrt.pop %v378
  %v686 = vmul.f32 %v685, %v378
  %v687 = vmul.f32 %v686, %v685
  %v688 = vmul.f32 0.5, %v687
  %v689 = vsub.f32 1.5, %v688
  %v690 = vmul.f32 %v685, %v689
  %v691 = vmul.f32 %v378, %v690
  %vm692 = vcmp.eq.f32.partialorder %v378, inf
  %v693 = vsel %vm692, %v378, %v691
  %vm694 = vcmp.eq.f32.partialorder %v378, 0.0
  %v695 = vand.u32 %v378, 2147483648
  %v696 = vsel %vm694, %v695, %v693
  %v697 = vrsqrt.pop %v379
  %v698 = vmul.f32 %v697, %v379
  %v699 = vmul.f32 %v698, %v697
  %v700 = vmul.f32 0.5, %v699
  %v701 = vsub.f32 1.5, %v700
  %v702 = vmul.f32 %v697, %v701
  %v703 = vmul.f32 %v379, %v702
  %vm704 = vcmp.eq.f32.partialorder %v379, inf
  %v705 = vsel %vm704, %v379, %v703
  %vm706 = vcmp.eq.f32.partialorder %v379, 0.0
  %v707 = vand.u32 %v379, 2147483648
  %v708 = vsel %vm706, %v707, %v705
  %v709 = vrsqrt.pop %v380
  %v710 = vmul.f32 %v709, %v380
  %v711 = vmul.f32 %v710, %v709
  %v712 = vmul.f32 0.5, %v711
  %v713 = vsub.f32 1.5, %v712
  %v714 = vmul.f32 %v709, %v713
  %v715 = vmul.f32 %v380, %v714
  %vm716 = vcmp.eq.f32.partialorder %v380, inf
  %v717 = vsel %vm716, %v380, %v715
  %vm718 = vcmp.eq.f32.partialorder %v380, 0.0
  %v719 = vand.u32 %v380, 2147483648
  %v720 = vsel %vm718, %v719, %v717
  %v721 = vrsqrt.pop %v381
  %v722 = vmul.f32 %v721, %v381
  %v723 = vmul.f32 %v722, %v721
  %v724 = vmul.f32 0.5, %v723
  %v725 = vsub.f32 1.5, %v724
  %v726 = vmul.f32 %v721, %v725
  %v727 = vmul.f32 %v381, %v726
  %vm728 = vcmp.eq.f32.partialorder %v381, inf
  %v729 = vsel %vm728, %v381, %v727
  %vm730 = vcmp.eq.f32.partialorder %v381, 0.0
  %v731 = vand.u32 %v381, 2147483648
  %v732 = vsel %vm730, %v731, %v729
  %v733 = vrsqrt.pop %v382
  %v734 = vmul.f32 %v733, %v382
  %v735 = vmul.f32 %v734, %v733
  %v736 = vmul.f32 0.5, %v735
  %v737 = vsub.f32 1.5, %v736
  %v738 = vmul.f32 %v733, %v737
  %v739 = vmul.f32 %v382, %v738
  %vm740 = vcmp.eq.f32.partialorder %v382, inf
  %v741 = vsel %vm740, %v382, %v739
  %vm742 = vcmp.eq.f32.partialorder %v382, 0.0
  %v743 = vand.u32 %v382, 2147483648
  %v744 = vsel %vm742, %v743, %v741
  %v745 = vrsqrt.pop %v383
  %v746 = vmul.f32 %v745, %v383
  %v747 = vmul.f32 %v746, %v745
  %v748 = vmul.f32 0.5, %v747
  %v749 = vsub.f32 1.5, %v748
  %v750 = vmul.f32 %v745, %v749
  %v751 = vmul.f32 %v383, %v750
  %vm752 = vcmp.eq.f32.partialorder %v383, inf
  %v753 = vsel %vm752, %v383, %v751
  %vm754 = vcmp.eq.f32.partialorder %v383, 0.0
  %v755 = vand.u32 %v383, 2147483648
  %v756 = vsel %vm754, %v755, %v753
  %v757 = vrsqrt.pop %v384
  %v758 = vmul.f32 %v757, %v384
  %v759 = vmul.f32 %v758, %v757
  %v760 = vmul.f32 0.5, %v759
  %v761 = vsub.f32 1.5, %v760
  %v762 = vmul.f32 %v757, %v761
  %v763 = vmul.f32 %v384, %v762
  %vm764 = vcmp.eq.f32.partialorder %v384, inf
  %v765 = vsel %vm764, %v384, %v763
  %vm766 = vcmp.eq.f32.partialorder %v384, 0.0
  %v767 = vand.u32 %v384, 2147483648
  %v768 = vsel %vm766, %v767, %v765
  %v769 = vld [vmem:[#allocation2] sm:$0x1]
  %v770 = vld [vmem:[#allocation3] sm:$0x1]
  %v772 = vperm.slane %v769, 0
  %773 = vset.pattern.permute.xlu0 0
  %774 = vperm.xlu0 %773, %v772
  %v775 = vpop.permute.xlu0 %774
  %v777 = vmul.f32 %v775, %v186
  %v778 = vmul.f32 %v775, %v187
  %v779 = vmul.f32 %v775, %v188
  %v780 = vmul.f32 %v775, %v189
  %v781 = vmul.f32 %v775, %v190
  %v782 = vmul.f32 %v775, %v191
  %v783 = vmul.f32 %v775, %v192
  %v784 = vmul.f32 %v775, %v193
  %v785 = vmul.f32 %v775, %v194
  %v786 = vmul.f32 %v775, %v195
  %v787 = vmul.f32 %v775, %v196
  %v788 = vmul.f32 %v775, %v197
  %v789 = vmul.f32 %v775, %v198
  %v790 = vmul.f32 %v775, %v199
  %v791 = vmul.f32 %v775, %v200
  %v792 = vmul.f32 %v775, %v201
  %v793 = vmul.f32 %v775, %v202
  %v794 = vmul.f32 %v775, %v203
  %v795 = vmul.f32 %v775, %v204
  %v796 = vmul.f32 %v775, %v205
  %v797 = vmul.f32 %v775, %v206
  %v798 = vmul.f32 %v775, %v207
  %v799 = vmul.f32 %v775, %v208
  %v800 = vmul.f32 %v775, %v209
  %v801 = vmul.f32 %v775, %v210
  %v802 = vmul.f32 %v775, %v211
  %v803 = vmul.f32 %v775, %v212
  %v804 = vmul.f32 %v775, %v213
  %v805 = vmul.f32 %v775, %v214
  %v806 = vmul.f32 %v775, %v215
  %v807 = vmul.f32 %v775, %v216
  %v808 = vmul.f32 %v775, %v217
  %v809 = vadd.f32 %v396, 1e-06
  %v810 = vadd.f32 %v408, 1e-06
  %v811 = vadd.f32 %v420, 1e-06
  %v812 = vadd.f32 %v432, 1e-06
  %v813 = vadd.f32 %v444, 1e-06
  %v814 = vadd.f32 %v456, 1e-06
  %v815 = vadd.f32 %v468, 1e-06
  %v816 = vadd.f32 %v480, 1e-06
  %v817 = vadd.f32 %v492, 1e-06
  %v818 = vadd.f32 %v504, 1e-06
  %v819 = vadd.f32 %v516, 1e-06
  %v820 = vadd.f32 %v528, 1e-06
  %v821 = vadd.f32 %v540, 1e-06
  %v822 = vadd.f32 %v552, 1e-06
  %v823 = vadd.f32 %v564, 1e-06
  %v824 = vadd.f32 %v576, 1e-06
  %v825 = vadd.f32 %v588, 1e-06
  %v826 = vadd.f32 %v600, 1e-06
  %v827 = vadd.f32 %v612, 1e-06
  %v828 = vadd.f32 %v624, 1e-06
  %v829 = vadd.f32 %v636, 1e-06
  %v830 = vadd.f32 %v648, 1e-06
  %v831 = vadd.f32 %v660, 1e-06
  %v832 = vadd.f32 %v672, 1e-06
  %v833 = vadd.f32 %v684, 1e-06
  %v834 = vadd.f32 %v696, 1e-06
  %v835 = vadd.f32 %v708, 1e-06
  %v836 = vadd.f32 %v720, 1e-06
  %v837 = vadd.f32 %v732, 1e-06
  %v838 = vadd.f32 %v744, 1e-06
  %v839 = vadd.f32 %v756, 1e-06
  %v840 = vadd.f32 %v768, 1e-06
  %v841 = vrcp.pop %v809
  %v842 = vmul.f32 %v809, %v841
  %v843 = vsub.f32 1.0, %v842
  %v844 = vmul.f32 %v841, %v843
  %v845 = vadd.f32 %v841, %v844
  %vm846 = vweird.f32 %v809
  %vm847 = vweird.f32 %v841
  %vm848 = vmor %vm846, %vm847
  %v849 = vsel %vm848, %v841, %v845
  %v850 = vand.u32 2147483647, %v809
  %vm851 = vcmp.eq.f32.partialorder %v850, 8.507059e+37
  %v852 = vand.u32 %v809, 2147483648
  %v853 = vor.u32 1.1754944e-38, %v852
  %v854 = vsel %vm851, %v853, %v849
  %v855 = vmul.f32 %v777, %v854
  %v856 = vrcp.pop %v810
  %v857 = vmul.f32 %v810, %v856
  %v858 = vsub.f32 1.0, %v857
  %v859 = vmul.f32 %v856, %v858
  %v860 = vadd.f32 %v856, %v859
  %vm861 = vweird.f32 %v810
  %vm862 = vweird.f32 %v856
  %vm863 = vmor %vm861, %vm862
  %v864 = vsel %vm863, %v856, %v860
  %v865 = vand.u32 2147483647, %v810
  %vm866 = vcmp.eq.f32.partialorder %v865, 8.507059e+37
  %v867 = vand.u32 %v810, 2147483648
  %v868 = vor.u32 1.1754944e-38, %v867
  %v869 = vsel %vm866, %v868, %v864
  %v870 = vmul.f32 %v778, %v869
  %v871 = vrcp.pop %v811
  %v872 = vmul.f32 %v811, %v871
  %v873 = vsub.f32 1.0, %v872
  %v874 = vmul.f32 %v871, %v873
  %v875 = vadd.f32 %v871, %v874
  %vm876 = vweird.f32 %v811
  %vm877 = vweird.f32 %v871
  %vm878 = vmor %vm876, %vm877
  %v879 = vsel %vm878, %v871, %v875
  %v880 = vand.u32 2147483647, %v811
  %vm881 = vcmp.eq.f32.partialorder %v880, 8.507059e+37
  %v882 = vand.u32 %v811, 2147483648
  %v883 = vor.u32 1.1754944e-38, %v882
  %v884 = vsel %vm881, %v883, %v879
  %v885 = vmul.f32 %v779, %v884
  %v886 = vrcp.pop %v812
  %v887 = vmul.f32 %v812, %v886
  %v888 = vsub.f32 1.0, %v887
  %v889 = vmul.f32 %v886, %v888
  %v890 = vadd.f32 %v886, %v889
  %vm891 = vweird.f32 %v812
  %vm892 = vweird.f32 %v886
  %vm893 = vmor %vm891, %vm892
  %v894 = vsel %vm893, %v886, %v890
  %v895 = vand.u32 2147483647, %v812
  %vm896 = vcmp.eq.f32.partialorder %v895, 8.507059e+37
  %v897 = vand.u32 %v812, 2147483648
  %v898 = vor.u32 1.1754944e-38, %v897
  %v899 = vsel %vm896, %v898, %v894
  %v900 = vmul.f32 %v780, %v899
  %v901 = vrcp.pop %v813
  %v902 = vmul.f32 %v813, %v901
  %v903 = vsub.f32 1.0, %v902
  %v904 = vmul.f32 %v901, %v903
  %v905 = vadd.f32 %v901, %v904
  %vm906 = vweird.f32 %v813
  %vm907 = vweird.f32 %v901
  %vm908 = vmor %vm906, %vm907
  %v909 = vsel %vm908, %v901, %v905
  %v910 = vand.u32 2147483647, %v813
  %vm911 = vcmp.eq.f32.partialorder %v910, 8.507059e+37
  %v912 = vand.u32 %v813, 2147483648
  %v913 = vor.u32 1.1754944e-38, %v912
  %v914 = vsel %vm911, %v913, %v909
  %v915 = vmul.f32 %v781, %v914
  %v916 = vrcp.pop %v814
  %v917 = vmul.f32 %v814, %v916
  %v918 = vsub.f32 1.0, %v917
  %v919 = vmul.f32 %v916, %v918
  %v920 = vadd.f32 %v916, %v919
  %vm921 = vweird.f32 %v814
  %vm922 = vweird.f32 %v916
  %vm923 = vmor %vm921, %vm922
  %v924 = vsel %vm923, %v916, %v920
  %v925 = vand.u32 2147483647, %v814
  %vm926 = vcmp.eq.f32.partialorder %v925, 8.507059e+37
  %v927 = vand.u32 %v814, 2147483648
  %v928 = vor.u32 1.1754944e-38, %v927
  %v929 = vsel %vm926, %v928, %v924
  %v930 = vmul.f32 %v782, %v929
  %v931 = vrcp.pop %v815
  %v932 = vmul.f32 %v815, %v931
  %v933 = vsub.f32 1.0, %v932
  %v934 = vmul.f32 %v931, %v933
  %v935 = vadd.f32 %v931, %v934
  %vm936 = vweird.f32 %v815
  %vm937 = vweird.f32 %v931
  %vm938 = vmor %vm936, %vm937
  %v939 = vsel %vm938, %v931, %v935
  %v940 = vand.u32 2147483647, %v815
  %vm941 = vcmp.eq.f32.partialorder %v940, 8.507059e+37
  %v942 = vand.u32 %v815, 2147483648
  %v943 = vor.u32 1.1754944e-38, %v942
  %v944 = vsel %vm941, %v943, %v939
  %v945 = vmul.f32 %v783, %v944
  %v946 = vrcp.pop %v816
  %v947 = vmul.f32 %v816, %v946
  %v948 = vsub.f32 1.0, %v947
  %v949 = vmul.f32 %v946, %v948
  %v950 = vadd.f32 %v946, %v949
  %vm951 = vweird.f32 %v816
  %vm952 = vweird.f32 %v946
  %vm953 = vmor %vm951, %vm952
  %v954 = vsel %vm953, %v946, %v950
  %v955 = vand.u32 2147483647, %v816
  %vm956 = vcmp.eq.f32.partialorder %v955, 8.507059e+37
  %v957 = vand.u32 %v816, 2147483648
  %v958 = vor.u32 1.1754944e-38, %v957
  %v959 = vsel %vm956, %v958, %v954
  %v960 = vmul.f32 %v784, %v959
  %v961 = vrcp.pop %v817
  %v962 = vmul.f32 %v817, %v961
  %v963 = vsub.f32 1.0, %v962
  %v964 = vmul.f32 %v961, %v963
  %v965 = vadd.f32 %v961, %v964
  %vm966 = vweird.f32 %v817
  %vm967 = vweird.f32 %v961
  %vm968 = vmor %vm966, %vm967
  %v969 = vsel %vm968, %v961, %v965
  %v970 = vand.u32 2147483647, %v817
  %vm971 = vcmp.eq.f32.partialorder %v970, 8.507059e+37
  %v972 = vand.u32 %v817, 2147483648
  %v973 = vor.u32 1.1754944e-38, %v972
  %v974 = vsel %vm971, %v973, %v969
  %v975 = vmul.f32 %v785, %v974
  %v976 = vrcp.pop %v818
  %v977 = vmul.f32 %v818, %v976
  %v978 = vsub.f32 1.0, %v977
  %v979 = vmul.f32 %v976, %v978
  %v980 = vadd.f32 %v976, %v979
  %vm981 = vweird.f32 %v818
  %vm982 = vweird.f32 %v976
  %vm983 = vmor %vm981, %vm982
  %v984 = vsel %vm983, %v976, %v980
  %v985 = vand.u32 2147483647, %v818
  %vm986 = vcmp.eq.f32.partialorder %v985, 8.507059e+37
  %v987 = vand.u32 %v818, 2147483648
  %v988 = vor.u32 1.1754944e-38, %v987
  %v989 = vsel %vm986, %v988, %v984
  %v990 = vmul.f32 %v786, %v989
  %v991 = vrcp.pop %v819
  %v992 = vmul.f32 %v819, %v991
  %v993 = vsub.f32 1.0, %v992
  %v994 = vmul.f32 %v991, %v993
  %v995 = vadd.f32 %v991, %v994
  %vm996 = vweird.f32 %v819
  %vm997 = vweird.f32 %v991
  %vm998 = vmor %vm996, %vm997
  %v999 = vsel %vm998, %v991, %v995
  %v1000 = vand.u32 2147483647, %v819
  %vm1001 = vcmp.eq.f32.partialorder %v1000, 8.507059e+37
  %v1002 = vand.u32 %v819, 2147483648
  %v1003 = vor.u32 1.1754944e-38, %v1002
  %v1004 = vsel %vm1001, %v1003, %v999
  %v1005 = vmul.f32 %v787, %v1004
  %v1006 = vrcp.pop %v820
  %v1007 = vmul.f32 %v820, %v1006
  %v1008 = vsub.f32 1.0, %v1007
  %v1009 = vmul.f32 %v1006, %v1008
  %v1010 = vadd.f32 %v1006, %v1009
  %vm1011 = vweird.f32 %v820
  %vm1012 = vweird.f32 %v1006
  %vm1013 = vmor %vm1011, %vm1012
  %v1014 = vsel %vm1013, %v1006, %v1010
  %v1015 = vand.u32 2147483647, %v820
  %vm1016 = vcmp.eq.f32.partialorder %v1015, 8.507059e+37
  %v1017 = vand.u32 %v820, 2147483648
  %v1018 = vor.u32 1.1754944e-38, %v1017
  %v1019 = vsel %vm1016, %v1018, %v1014
  %v1020 = vmul.f32 %v788, %v1019
  %v1021 = vrcp.pop %v821
  %v1022 = vmul.f32 %v821, %v1021
  %v1023 = vsub.f32 1.0, %v1022
  %v1024 = vmul.f32 %v1021, %v1023
  %v1025 = vadd.f32 %v1021, %v1024
  %vm1026 = vweird.f32 %v821
  %vm1027 = vweird.f32 %v1021
  %vm1028 = vmor %vm1026, %vm1027
  %v1029 = vsel %vm1028, %v1021, %v1025
  %v1030 = vand.u32 2147483647, %v821
  %vm1031 = vcmp.eq.f32.partialorder %v1030, 8.507059e+37
  %v1032 = vand.u32 %v821, 2147483648
  %v1033 = vor.u32 1.1754944e-38, %v1032
  %v1034 = vsel %vm1031, %v1033, %v1029
  %v1035 = vmul.f32 %v789, %v1034
  %v1036 = vrcp.pop %v822
  %v1037 = vmul.f32 %v822, %v1036
  %v1038 = vsub.f32 1.0, %v1037
  %v1039 = vmul.f32 %v1036, %v1038
  %v1040 = vadd.f32 %v1036, %v1039
  %vm1041 = vweird.f32 %v822
  %vm1042 = vweird.f32 %v1036
  %vm1043 = vmor %vm1041, %vm1042
  %v1044 = vsel %vm1043, %v1036, %v1040
  %v1045 = vand.u32 2147483647, %v822
  %vm1046 = vcmp.eq.f32.partialorder %v1045, 8.507059e+37
  %v1047 = vand.u32 %v822, 2147483648
  %v1048 = vor.u32 1.1754944e-38, %v1047
  %v1049 = vsel %vm1046, %v1048, %v1044
  %v1050 = vmul.f32 %v790, %v1049
  %v1051 = vrcp.pop %v823
  %v1052 = vmul.f32 %v823, %v1051
  %v1053 = vsub.f32 1.0, %v1052
  %v1054 = vmul.f32 %v1051, %v1053
  %v1055 = vadd.f32 %v1051, %v1054
  %vm1056 = vweird.f32 %v823
  %vm1057 = vweird.f32 %v1051
  %vm1058 = vmor %vm1056, %vm1057
  %v1059 = vsel %vm1058, %v1051, %v1055
  %v1060 = vand.u32 2147483647, %v823
  %vm1061 = vcmp.eq.f32.partialorder %v1060, 8.507059e+37
  %v1062 = vand.u32 %v823, 2147483648
  %v1063 = vor.u32 1.1754944e-38, %v1062
  %v1064 = vsel %vm1061, %v1063, %v1059
  %v1065 = vmul.f32 %v791, %v1064
  %v1066 = vrcp.pop %v824
  %v1067 = vmul.f32 %v824, %v1066
  %v1068 = vsub.f32 1.0, %v1067
  %v1069 = vmul.f32 %v1066, %v1068
  %v1070 = vadd.f32 %v1066, %v1069
  %vm1071 = vweird.f32 %v824
  %vm1072 = vweird.f32 %v1066
  %vm1073 = vmor %vm1071, %vm1072
  %v1074 = vsel %vm1073, %v1066, %v1070
  %v1075 = vand.u32 2147483647, %v824
  %vm1076 = vcmp.eq.f32.partialorder %v1075, 8.507059e+37
  %v1077 = vand.u32 %v824, 2147483648
  %v1078 = vor.u32 1.1754944e-38, %v1077
  %v1079 = vsel %vm1076, %v1078, %v1074
  %v1080 = vmul.f32 %v792, %v1079
  %v1081 = vrcp.pop %v825
  %v1082 = vmul.f32 %v825, %v1081
  %v1083 = vsub.f32 1.0, %v1082
  %v1084 = vmul.f32 %v1081, %v1083
  %v1085 = vadd.f32 %v1081, %v1084
  %vm1086 = vweird.f32 %v825
  %vm1087 = vweird.f32 %v1081
  %vm1088 = vmor %vm1086, %vm1087
  %v1089 = vsel %vm1088, %v1081, %v1085
  %v1090 = vand.u32 2147483647, %v825
  %vm1091 = vcmp.eq.f32.partialorder %v1090, 8.507059e+37
  %v1092 = vand.u32 %v825, 2147483648
  %v1093 = vor.u32 1.1754944e-38, %v1092
  %v1094 = vsel %vm1091, %v1093, %v1089
  %v1095 = vmul.f32 %v793, %v1094
  %v1096 = vrcp.pop %v826
  %v1097 = vmul.f32 %v826, %v1096
  %v1098 = vsub.f32 1.0, %v1097
  %v1099 = vmul.f32 %v1096, %v1098
  %v1100 = vadd.f32 %v1096, %v1099
  %vm1101 = vweird.f32 %v826
  %vm1102 = vweird.f32 %v1096
  %vm1103 = vmor %vm1101, %vm1102
  %v1104 = vsel %vm1103, %v1096, %v1100
  %v1105 = vand.u32 2147483647, %v826
  %vm1106 = vcmp.eq.f32.partialorder %v1105, 8.507059e+37
  %v1107 = vand.u32 %v826, 2147483648
  %v1108 = vor.u32 1.1754944e-38, %v1107
  %v1109 = vsel %vm1106, %v1108, %v1104
  %v1110 = vmul.f32 %v794, %v1109
  %v1111 = vrcp.pop %v827
  %v1112 = vmul.f32 %v827, %v1111
  %v1113 = vsub.f32 1.0, %v1112
  %v1114 = vmul.f32 %v1111, %v1113
  %v1115 = vadd.f32 %v1111, %v1114
  %vm1116 = vweird.f32 %v827
  %vm1117 = vweird.f32 %v1111
  %vm1118 = vmor %vm1116, %vm1117
  %v1119 = vsel %vm1118, %v1111, %v1115
  %v1120 = vand.u32 2147483647, %v827
  %vm1121 = vcmp.eq.f32.partialorder %v1120, 8.507059e+37
  %v1122 = vand.u32 %v827, 2147483648
  %v1123 = vor.u32 1.1754944e-38, %v1122
  %v1124 = vsel %vm1121, %v1123, %v1119
  %v1125 = vmul.f32 %v795, %v1124
  %v1126 = vrcp.pop %v828
  %v1127 = vmul.f32 %v828, %v1126
  %v1128 = vsub.f32 1.0, %v1127
  %v1129 = vmul.f32 %v1126, %v1128
  %v1130 = vadd.f32 %v1126, %v1129
  %vm1131 = vweird.f32 %v828
  %vm1132 = vweird.f32 %v1126
  %vm1133 = vmor %vm1131, %vm1132
  %v1134 = vsel %vm1133, %v1126, %v1130
  %v1135 = vand.u32 2147483647, %v828
  %vm1136 = vcmp.eq.f32.partialorder %v1135, 8.507059e+37
  %v1137 = vand.u32 %v828, 2147483648
  %v1138 = vor.u32 1.1754944e-38, %v1137
  %v1139 = vsel %vm1136, %v1138, %v1134
  %v1140 = vmul.f32 %v796, %v1139
  %v1141 = vrcp.pop %v829
  %v1142 = vmul.f32 %v829, %v1141
  %v1143 = vsub.f32 1.0, %v1142
  %v1144 = vmul.f32 %v1141, %v1143
  %v1145 = vadd.f32 %v1141, %v1144
  %vm1146 = vweird.f32 %v829
  %vm1147 = vweird.f32 %v1141
  %vm1148 = vmor %vm1146, %vm1147
  %v1149 = vsel %vm1148, %v1141, %v1145
  %v1150 = vand.u32 2147483647, %v829
  %vm1151 = vcmp.eq.f32.partialorder %v1150, 8.507059e+37
  %v1152 = vand.u32 %v829, 2147483648
  %v1153 = vor.u32 1.1754944e-38, %v1152
  %v1154 = vsel %vm1151, %v1153, %v1149
  %v1155 = vmul.f32 %v797, %v1154
  %v1156 = vrcp.pop %v830
  %v1157 = vmul.f32 %v830, %v1156
  %v1158 = vsub.f32 1.0, %v1157
  %v1159 = vmul.f32 %v1156, %v1158
  %v1160 = vadd.f32 %v1156, %v1159
  %vm1161 = vweird.f32 %v830
  %vm1162 = vweird.f32 %v1156
  %vm1163 = vmor %vm1161, %vm1162
  %v1164 = vsel %vm1163, %v1156, %v1160
  %v1165 = vand.u32 2147483647, %v830
  %vm1166 = vcmp.eq.f32.partialorder %v1165, 8.507059e+37
  %v1167 = vand.u32 %v830, 2147483648
  %v1168 = vor.u32 1.1754944e-38, %v1167
  %v1169 = vsel %vm1166, %v1168, %v1164
  %v1170 = vmul.f32 %v798, %v1169
  %v1171 = vrcp.pop %v831
  %v1172 = vmul.f32 %v831, %v1171
  %v1173 = vsub.f32 1.0, %v1172
  %v1174 = vmul.f32 %v1171, %v1173
  %v1175 = vadd.f32 %v1171, %v1174
  %vm1176 = vweird.f32 %v831
  %vm1177 = vweird.f32 %v1171
  %vm1178 = vmor %vm1176, %vm1177
  %v1179 = vsel %vm1178, %v1171, %v1175
  %v1180 = vand.u32 2147483647, %v831
  %vm1181 = vcmp.eq.f32.partialorder %v1180, 8.507059e+37
  %v1182 = vand.u32 %v831, 2147483648
  %v1183 = vor.u32 1.1754944e-38, %v1182
  %v1184 = vsel %vm1181, %v1183, %v1179
  %v1185 = vmul.f32 %v799, %v1184
  %v1186 = vrcp.pop %v832
  %v1187 = vmul.f32 %v832, %v1186
  %v1188 = vsub.f32 1.0, %v1187
  %v1189 = vmul.f32 %v1186, %v1188
  %v1190 = vadd.f32 %v1186, %v1189
  %vm1191 = vweird.f32 %v832
  %vm1192 = vweird.f32 %v1186
  %vm1193 = vmor %vm1191, %vm1192
  %v1194 = vsel %vm1193, %v1186, %v1190
  %v1195 = vand.u32 2147483647, %v832
  %vm1196 = vcmp.eq.f32.partialorder %v1195, 8.507059e+37
  %v1197 = vand.u32 %v832, 2147483648
  %v1198 = vor.u32 1.1754944e-38, %v1197
  %v1199 = vsel %vm1196, %v1198, %v1194
  %v1200 = vmul.f32 %v800, %v1199
  %v1201 = vrcp.pop %v833
  %v1202 = vmul.f32 %v833, %v1201
  %v1203 = vsub.f32 1.0, %v1202
  %v1204 = vmul.f32 %v1201, %v1203
  %v1205 = vadd.f32 %v1201, %v1204
  %vm1206 = vweird.f32 %v833
  %vm1207 = vweird.f32 %v1201
  %vm1208 = vmor %vm1206, %vm1207
  %v1209 = vsel %vm1208, %v1201, %v1205
  %v1210 = vand.u32 2147483647, %v833
  %vm1211 = vcmp.eq.f32.partialorder %v1210, 8.507059e+37
  %v1212 = vand.u32 %v833, 2147483648
  %v1213 = vor.u32 1.1754944e-38, %v1212
  %v1214 = vsel %vm1211, %v1213, %v1209
  %v1215 = vmul.f32 %v801, %v1214
  %v1216 = vrcp.pop %v834
  %v1217 = vmul.f32 %v834, %v1216
  %v1218 = vsub.f32 1.0, %v1217
  %v1219 = vmul.f32 %v1216, %v1218
  %v1220 = vadd.f32 %v1216, %v1219
  %vm1221 = vweird.f32 %v834
  %vm1222 = vweird.f32 %v1216
  %vm1223 = vmor %vm1221, %vm1222
  %v1224 = vsel %vm1223, %v1216, %v1220
  %v1225 = vand.u32 2147483647, %v834
  %vm1226 = vcmp.eq.f32.partialorder %v1225, 8.507059e+37
  %v1227 = vand.u32 %v834, 2147483648
  %v1228 = vor.u32 1.1754944e-38, %v1227
  %v1229 = vsel %vm1226, %v1228, %v1224
  %v1230 = vmul.f32 %v802, %v1229
  %v1231 = vrcp.pop %v835
  %v1232 = vmul.f32 %v835, %v1231
  %v1233 = vsub.f32 1.0, %v1232
  %v1234 = vmul.f32 %v1231, %v1233
  %v1235 = vadd.f32 %v1231, %v1234
  %vm1236 = vweird.f32 %v835
  %vm1237 = vweird.f32 %v1231
  %vm1238 = vmor %vm1236, %vm1237
  %v1239 = vsel %vm1238, %v1231, %v1235
  %v1240 = vand.u32 2147483647, %v835
  %vm1241 = vcmp.eq.f32.partialorder %v1240, 8.507059e+37
  %v1242 = vand.u32 %v835, 2147483648
  %v1243 = vor.u32 1.1754944e-38, %v1242
  %v1244 = vsel %vm1241, %v1243, %v1239
  %v1245 = vmul.f32 %v803, %v1244
  %v1246 = vrcp.pop %v836
  %v1247 = vmul.f32 %v836, %v1246
  %v1248 = vsub.f32 1.0, %v1247
  %v1249 = vmul.f32 %v1246, %v1248
  %v1250 = vadd.f32 %v1246, %v1249
  %vm1251 = vweird.f32 %v836
  %vm1252 = vweird.f32 %v1246
  %vm1253 = vmor %vm1251, %vm1252
  %v1254 = vsel %vm1253, %v1246, %v1250
  %v1255 = vand.u32 2147483647, %v836
  %vm1256 = vcmp.eq.f32.partialorder %v1255, 8.507059e+37
  %v1257 = vand.u32 %v836, 2147483648
  %v1258 = vor.u32 1.1754944e-38, %v1257
  %v1259 = vsel %vm1256, %v1258, %v1254
  %v1260 = vmul.f32 %v804, %v1259
  %v1261 = vrcp.pop %v837
  %v1262 = vmul.f32 %v837, %v1261
  %v1263 = vsub.f32 1.0, %v1262
  %v1264 = vmul.f32 %v1261, %v1263
  %v1265 = vadd.f32 %v1261, %v1264
  %vm1266 = vweird.f32 %v837
  %vm1267 = vweird.f32 %v1261
  %vm1268 = vmor %vm1266, %vm1267
  %v1269 = vsel %vm1268, %v1261, %v1265
  %v1270 = vand.u32 2147483647, %v837
  %vm1271 = vcmp.eq.f32.partialorder %v1270, 8.507059e+37
  %v1272 = vand.u32 %v837, 2147483648
  %v1273 = vor.u32 1.1754944e-38, %v1272
  %v1274 = vsel %vm1271, %v1273, %v1269
  %v1275 = vmul.f32 %v805, %v1274
  %v1276 = vrcp.pop %v838
  %v1277 = vmul.f32 %v838, %v1276
  %v1278 = vsub.f32 1.0, %v1277
  %v1279 = vmul.f32 %v1276, %v1278
  %v1280 = vadd.f32 %v1276, %v1279
  %vm1281 = vweird.f32 %v838
  %vm1282 = vweird.f32 %v1276
  %vm1283 = vmor %vm1281, %vm1282
  %v1284 = vsel %vm1283, %v1276, %v1280
  %v1285 = vand.u32 2147483647, %v838
  %vm1286 = vcmp.eq.f32.partialorder %v1285, 8.507059e+37
  %v1287 = vand.u32 %v838, 2147483648
  %v1288 = vor.u32 1.1754944e-38, %v1287
  %v1289 = vsel %vm1286, %v1288, %v1284
  %v1290 = vmul.f32 %v806, %v1289
  %v1291 = vrcp.pop %v839
  %v1292 = vmul.f32 %v839, %v1291
  %v1293 = vsub.f32 1.0, %v1292
  %v1294 = vmul.f32 %v1291, %v1293
  %v1295 = vadd.f32 %v1291, %v1294
  %vm1296 = vweird.f32 %v839
  %vm1297 = vweird.f32 %v1291
  %vm1298 = vmor %vm1296, %vm1297
  %v1299 = vsel %vm1298, %v1291, %v1295
  %v1300 = vand.u32 2147483647, %v839
  %vm1301 = vcmp.eq.f32.partialorder %v1300, 8.507059e+37
  %v1302 = vand.u32 %v839, 2147483648
  %v1303 = vor.u32 1.1754944e-38, %v1302
  %v1304 = vsel %vm1301, %v1303, %v1299
  %v1305 = vmul.f32 %v807, %v1304
  %v1306 = vrcp.pop %v840
  %v1307 = vmul.f32 %v840, %v1306
  %v1308 = vsub.f32 1.0, %v1307
  %v1309 = vmul.f32 %v1306, %v1308
  %v1310 = vadd.f32 %v1306, %v1309
  %vm1311 = vweird.f32 %v840
  %vm1312 = vweird.f32 %v1306
  %vm1313 = vmor %vm1311, %vm1312
  %v1314 = vsel %vm1313, %v1306, %v1310
  %v1315 = vand.u32 2147483647, %v840
  %vm1316 = vcmp.eq.f32.partialorder %v1315, 8.507059e+37
  %v1317 = vand.u32 %v840, 2147483648
  %v1318 = vor.u32 1.1754944e-38, %v1317
  %v1319 = vsel %vm1316, %v1318, %v1314
  %v1320 = vmul.f32 %v808, %v1319
  %v1322 = vperm.slane %v770, 0
  %1323 = vset.pattern.permute.xlu0 0
  %1324 = vperm.xlu0 %1323, %v1322
  %v1325 = vpop.permute.xlu0 %1324
  %v1327 = vadd.f32 %v855, %v1325
  %v1328 = vadd.f32 %v870, %v1325
  %v1329 = vadd.f32 %v885, %v1325
  %v1330 = vadd.f32 %v900, %v1325
  %v1331 = vadd.f32 %v915, %v1325
  %v1332 = vadd.f32 %v930, %v1325
  %v1333 = vadd.f32 %v945, %v1325
  %v1334 = vadd.f32 %v960, %v1325
  %v1335 = vadd.f32 %v975, %v1325
  %v1336 = vadd.f32 %v990, %v1325
  %v1337 = vadd.f32 %v1005, %v1325
  %v1338 = vadd.f32 %v1020, %v1325
  %v1339 = vadd.f32 %v1035, %v1325
  %v1340 = vadd.f32 %v1050, %v1325
  %v1341 = vadd.f32 %v1065, %v1325
  %v1342 = vadd.f32 %v1080, %v1325
  %v1343 = vadd.f32 %v1095, %v1325
  %v1344 = vadd.f32 %v1110, %v1325
  %v1345 = vadd.f32 %v1125, %v1325
  %v1346 = vadd.f32 %v1140, %v1325
  %v1347 = vadd.f32 %v1155, %v1325
  %v1348 = vadd.f32 %v1170, %v1325
  %v1349 = vadd.f32 %v1185, %v1325
  %v1350 = vadd.f32 %v1200, %v1325
  %v1351 = vadd.f32 %v1215, %v1325
  %v1352 = vadd.f32 %v1230, %v1325
  %v1353 = vadd.f32 %v1245, %v1325
  %v1354 = vadd.f32 %v1260, %v1325
  %v1355 = vadd.f32 %v1275, %v1325
  %v1356 = vadd.f32 %v1290, %v1325
  %v1357 = vadd.f32 %v1305, %v1325
  %v1358 = vadd.f32 %v1320, %v1325
  %1359 = vst.msk [vmem:[%s3] sm:$0xff] %vm50, %v1327
  %1360 = vst.msk [vmem:[%s3 + $0x8] sm:$0xff] %vm50, %v1328
  %1361 = vst.msk [vmem:[%s3 + $0x10] sm:$0xff] %vm50, %v1329
  %1362 = vst.msk [vmem:[%s3 + $0x18] sm:$0xff] %vm50, %v1330
  %1363 = vst.msk [vmem:[%s3 + $0x20] sm:$0xff] %vm50, %v1331
  %1364 = vst.msk [vmem:[%s3 + $0x28] sm:$0xff] %vm50, %v1332
  %1365 = vst.msk [vmem:[%s3 + $0x30] sm:$0xff] %vm50, %v1333
  %1366 = vst.msk [vmem:[%s3 + $0x38] sm:$0xff] %vm50, %v1334
  %1367 = vst.msk [vmem:[%s3 + $0x40] sm:$0xff] %vm50, %v1335
  %1368 = vst.msk [vmem:[%s3 + $0x48] sm:$0xff] %vm50, %v1336
  %1369 = vst.msk [vmem:[%s3 + $0x50] sm:$0xff] %vm50, %v1337
  %1370 = vst.msk [vmem:[%s3 + $0x58] sm:$0xff] %vm50, %v1338
  %1371 = vst.msk [vmem:[%s3 + $0x60] sm:$0xff] %vm50, %v1339
  %1372 = vst.msk [vmem:[%s3 + $0x68] sm:$0xff] %vm50, %v1340
  %1373 = vst.msk [vmem:[%s3 + $0x70] sm:$0xff] %vm50, %v1341
  %1374 = vst.msk [vmem:[%s3 + $0x78] sm:$0xff] %vm50, %v1342
  %1375 = vst.msk [vmem:[%s3 + $0x80] sm:$0xff] %vm50, %v1343
  %1376 = vst.msk [vmem:[%s3 + $0x88] sm:$0xff] %vm50, %v1344
  %1377 = vst.msk [vmem:[%s3 + $0x90] sm:$0xff] %vm50, %v1345
  %1378 = vst.msk [vmem:[%s3 + $0x98] sm:$0xff] %vm50, %v1346
  %1379 = vst.msk [vmem:[%s3 + $0xa0] sm:$0xff] %vm50, %v1347
  %1380 = vst.msk [vmem:[%s3 + $0xa8] sm:$0xff] %vm50, %v1348
  %1381 = vst.msk [vmem:[%s3 + $0xb0] sm:$0xff] %vm50, %v1349
  %1382 = vst.msk [vmem:[%s3 + $0xb8] sm:$0xff] %vm50, %v1350
  %1383 = vst.msk [vmem:[%s3 + $0xc0] sm:$0xff] %vm50, %v1351
  %1384 = vst.msk [vmem:[%s3 + $0xc8] sm:$0xff] %vm50, %v1352
  %1385 = vst.msk [vmem:[%s3 + $0xd0] sm:$0xff] %vm50, %v1353
  %1386 = vst.msk [vmem:[%s3 + $0xd8] sm:$0xff] %vm50, %v1354
  %1387 = vst.msk [vmem:[%s3 + $0xe0] sm:$0xff] %vm50, %v1355
  %1388 = vst.msk [vmem:[%s3 + $0xe8] sm:$0xff] %vm50, %v1356
  %1389 = vst.msk [vmem:[%s3 + $0xf0] sm:$0xff] %vm50, %v1357
  %1390 = vst.msk [vmem:[%s3 + $0xf8] sm:$0xff] %vm50, %v1358
  // Predicated region
  $region14: #{encoder_forward.1} parent=0 // pred_check
    _
  $region15: #{encoder_forward.1} parent=0 // pred_check_branch
    %1392 = sbr.rel (0) target = $region17
  $region16: #{encoder_forward.1} parent=0 // pred_region
    _
  $region17: #{encoder_forward.1} parent=0 // pred_fallthru
    _
  // Predicated region
  $region18: #{encoder_forward.1} parent=0 // pred_check
    _
  $region19: #{encoder_forward.1} parent=0 // pred_check_branch
    %1394 = sbr.rel (0) target = $region21
  $region20: #{encoder_forward.1} parent=0 // pred_region
    _
  $region21: #{encoder_forward.1} parent=0 // pred_fallthru
    _

</llo_original>
